<compile_context>
chip_gen: v7x
topology: tpu7x:2x2x1
jax: 0.10.0
libtpu: 0.0.40
codegen_flags: <defaults>
</compile_context>

<pallas_src>
import functools

import jax
import jax.numpy as jnp
from jax.experimental import pallas as pl
from jax.experimental.pallas import tpu as pltpu


_NEG_BIG = -1e30  # finite "minus infinity": safe for bf16/f32, exp() -> 0


def _round_up(x, m):
    return ((x + m - 1) // m) * m


def _vmem_limit_bytes():
    """Scoped-VMEM limit to request: ~3/4 of physical, capped at 96 MiB."""
    try:
        cap = pltpu.get_tpu_info().vmem_capacity_bytes
    except Exception:
        cap = 64 * 2**20  # conservative fallback (v7x physical per-core VMEM)
    return int(min(cap * 3 // 4, 96 * 2**20))


def _pick_tile_n(n_rows, v_pad, in_itemsize, budget_bytes, row_mult):
    """Largest row tile such that the steady-state working set fits the budget.

    Per logits row resident in VMEM at steady state:
      2 double-buffered input blocks            : 2 * v_pad * itemsize
      ~3 f32 (tile_n, v_pad) vector intermediates: 3 * v_pad * 4
      label + per-row-loss blocks (lane-padded)  : 4 * 128 * 4
    """
    per_row = v_pad * (2 * in_itemsize + 3 * 4) + 4 * 128 * 4
    tile_n = max(row_mult, (budget_bytes // per_row) // row_mult * row_mult)
    n_aligned = _round_up(n_rows, row_mult)
    tile_n = min(tile_n, n_aligned)   # never bigger than the problem itself
    tile_n = min(tile_n, 1024)        # beyond this, pipelining gains nothing
    return tile_n


def _ce_row_loss_kernel(pred_ref, label_ref, rowloss_ref, *, total_n):
    """Per-row cross-entropy for one (tile_n, V_pad) block of logits."""
    tile_n = rowloss_ref.shape[0]
    step = pl.program_id(0)

    logits = pred_ref[...].astype(jnp.float32)          # (tile_n, V_pad)
    labels = label_ref[...]                              # (tile_n, 1) int32

    # numerically-stable logsumexp per row
    m = jnp.max(logits, axis=-1, keepdims=True)           # (tile_n, 1)
    lse = jnp.log(jnp.sum(jnp.exp(logits - m), axis=-1, keepdims=True)) + m

    # gather logits[n, labels[n]] with a lane-iota select (no one-hot multiply)
    col = jax.lax.broadcasted_iota(jnp.int32, logits.shape, 1)
    picked = jnp.sum(jnp.where(col == labels, logits, 0.0),
                     axis=-1, keepdims=True)              # (tile_n, 1)

    # zero out padded rows (global row index >= total_n)
    row = step * tile_n + jax.lax.broadcasted_iota(jnp.int32, (tile_n, 1), 0)
    rowloss_ref[...] = jnp.where(row < total_n, lse - picked, 0.0)


def attn_loss(pred, targets, targets_lengths=None, *, tile_n=None,
              vmem_limit_bytes=None):
    """pred: (B, T, V) float logits (f32 or bf16); targets: (B, T+1) int labels.

    targets_lengths is accepted (to match the PyTorch signature) but unused,
    exactly as in the reference forward pass.
    """
    B, T, V = pred.shape
    label = targets[:, 1:]                                 # (B, T)
    N = B * T
    logits = pred.reshape(N, V)
    labels = label.reshape(N).astype(jnp.int32)

    itemsize = jnp.dtype(logits.dtype).itemsize
    # sublane packing granularity: f32 -> 8 rows, bf16 -> 16, int8/fp8 -> 32
    row_mult = 8 if itemsize >= 4 else (16 if itemsize == 2 else 32)

    if vmem_limit_bytes is None:
        vmem_limit_bytes = _vmem_limit_bytes()
    budget = vmem_limit_bytes * 3 // 4

    V_pad = _round_up(V, 128)
    if tile_n is None:
        tile_n = _pick_tile_n(N, V_pad, itemsize, budget, row_mult)
    else:
        assert tile_n % row_mult == 0, (
            f"tile_n must be a multiple of {row_mult} for dtype {logits.dtype}")

    N_pad = _round_up(N, tile_n)
    num_tiles = N_pad // tile_n

    if V_pad != V or N_pad != N:
        logits = jnp.pad(logits, ((0, N_pad - N), (0, V_pad - V)),
                         constant_values=_NEG_BIG)
    if N_pad != N:
        labels = jnp.pad(labels, (0, N_pad - N))           # pad labels with 0
    labels2d = labels.reshape(N_pad, 1)

    cost = pl.CostEstimate(
        flops=6 * N_pad * V_pad,
        transcendentals=N_pad * V_pad,
        bytes_accessed=N_pad * V_pad * itemsize + N_pad * 4 + N_pad * 4,
    )

    rowloss = pl.pallas_call(
        functools.partial(_ce_row_loss_kernel, total_n=N),
        out_shape=jax.ShapeDtypeStruct((N_pad, 1), jnp.float32),
        grid_spec=pltpu.PrefetchScalarGridSpec(
            num_scalar_prefetch=0,
            grid=(num_tiles,),
            in_specs=[
                pl.BlockSpec((tile_n, V_pad), lambda i: (i, 0)),
                pl.BlockSpec((tile_n, 1), lambda i: (i, 0)),
            ],
            out_specs=pl.BlockSpec((tile_n, 1), lambda i: (i, 0)),
        ),
        compiler_params=pltpu.CompilerParams(
            dimension_semantics=("parallel",),
            vmem_limit_bytes=vmem_limit_bytes,
        ),
        cost_estimate=cost,
    )(logits, labels2d)

    # padded rows were written as exactly 0, so a plain sum is correct
    return jnp.sum(rowloss) / jnp.float32(N)


def _reference_loss(pred, targets):
    # pure-JAX reference for sanity checking
    B, T, V = pred.shape
    label = targets[:, 1:].reshape(-1)
    logits = pred.reshape(-1, V).astype(jnp.float32)
    lse = jax.nn.logsumexp(logits, axis=-1)
    picked = jnp.take_along_axis(logits, label[:, None], axis=-1)[:, 0]
    return jnp.mean(lse - picked)


if __name__ == "__main__":
    # Small shapes implied by the forward: pred (B, T, V), targets (B, T+1).
    B, T, V = 2, 8, 32
    key = jax.random.PRNGKey(0)
    k_pred, k_lab = jax.random.split(key)

    pred = jax.random.normal(k_pred, (B, T, V), dtype=jnp.float32)
    targets = jax.random.randint(k_lab, (B, T + 1), 0, V, dtype=jnp.int32)
    targets_lengths = jnp.full((B,), T, dtype=jnp.int32)  # unused, as in torch

    ref = _reference_loss(pred, targets)

    # 1) default (auto tile) path, f32 logits
    loss = jax.block_until_ready(attn_loss(pred, targets, targets_lengths))
    assert jnp.allclose(loss, ref, atol=1e-5, rtol=1e-5), (loss, ref)

    # 2) multi-tile parallel-grid path (forces 2 grid steps with row padding)
    loss_tiled = jax.block_until_ready(
        attn_loss(pred, targets, targets_lengths, tile_n=8))
    assert jnp.allclose(loss_tiled, ref, atol=1e-5, rtol=1e-5), (loss_tiled, ref)

    # 3) bf16 logits path (kernel widens to f32 after load)
    pred_bf16 = pred.astype(jnp.bfloat16)
    ref_bf16 = _reference_loss(pred_bf16, targets)
    loss_bf16 = jax.block_until_ready(
        attn_loss(pred_bf16, targets, targets_lengths))
    assert jnp.allclose(loss_bf16, ref_bf16, atol=1e-4, rtol=1e-4), (
        loss_bf16, ref_bf16)

    print("KERNEL_OK")
</pallas_src>

<mosaic_0001>
module attributes {stable_mosaic.version = 11 : i64} {
  func.func @_ce_row_loss_kernel(%arg0: i32, %arg1: memref<16x128xf32, #tpu.memory_space<vmem>>, %arg2: memref<16x1xi32, #tpu.memory_space<vmem>>, %arg3: memref<16x1xf32, #tpu.memory_space<vmem>>) attributes {dimension_semantics = [#tpu.dimension_semantics<parallel>], iteration_bounds = array<i64: 1>, scalar_prefetch = 0 : i64, scratch_operands = 0 : i64, tpu.core_type = #tpu.core_type<tc>, window_params = [{transform_indices = @transform_0, window_bounds = array<i64: 16, 128>}, {transform_indices = @transform_1, window_bounds = array<i64: 16, 1>}, {transform_indices = @transform_2, window_bounds = array<i64: 16, 1>}]} {
    %c0 = arith.constant 0 : index
    %c0_0 = arith.constant 0 : index
    %0 = vector.load %arg1[%c0, %c0_0] : memref<16x128xf32, #tpu.memory_space<vmem>>, vector<16x128xf32>
    %c0_1 = arith.constant 0 : index
    %c0_2 = arith.constant 0 : index
    %1 = vector.load %arg2[%c0_1, %c0_2] : memref<16x1xi32, #tpu.memory_space<vmem>>, vector<16x1xi32>
    %cst = arith.constant dense<0xFF800000> : vector<16xf32>
    %2 = vector.multi_reduction <maximumf>, %0, %cst [1] : vector<16x128xf32> to vector<16xf32>
    %3 = vector.shape_cast %2 : vector<16xf32> to vector<16x1xf32>
    %4 = vector.broadcast %3 : vector<16x1xf32> to vector<16x128xf32>
    %5 = arith.subf %0, %4 : vector<16x128xf32>
    %6 = math.exp %5 : vector<16x128xf32>
    %cst_3 = arith.constant dense<0.000000e+00> : vector<16xf32>
    %7 = vector.multi_reduction <add>, %6, %cst_3 [1] : vector<16x128xf32> to vector<16xf32>
    %8 = vector.shape_cast %7 : vector<16xf32> to vector<16x1xf32>
    %9 = math.log %8 : vector<16x1xf32>
    %10 = arith.addf %9, %3 : vector<16x1xf32>
    %11 = tpu.iota {dimensions = array<i32: 1>} : vector<16x128xi32>
    %12 = vector.broadcast %1 : vector<16x1xi32> to vector<16x128xi32>
    %13 = arith.cmpi eq, %11, %12 : vector<16x128xi32>
    %cst_4 = arith.constant 0.000000e+00 : f32
    %14 = vector.broadcast %cst_4 : f32 to vector<16x128xf32>
    %15 = arith.select %13, %0, %14 : vector<16x128xi1>, vector<16x128xf32>
    %cst_5 = arith.constant dense<0.000000e+00> : vector<16xf32>
    %16 = vector.multi_reduction <add>, %15, %cst_5 [1] : vector<16x128xf32> to vector<16xf32>
    %17 = vector.shape_cast %16 : vector<16xf32> to vector<16x1xf32>
    %c16_i32 = arith.constant 16 : i32
    %18 = arith.muli %arg0, %c16_i32 : i32
    %19 = tpu.iota {dimensions = array<i32: 0>} : vector<16x1xi32>
    %20 = vector.broadcast %18 : i32 to vector<16x1xi32>
    %21 = arith.addi %20, %19 : vector<16x1xi32>
    %c16_i32_6 = arith.constant 16 : i32
    %22 = vector.broadcast %c16_i32_6 : i32 to vector<16x1xi32>
    %23 = arith.cmpi slt, %21, %22 : vector<16x1xi32>
    %24 = arith.subf %10, %17 : vector<16x1xf32>
    %cst_7 = arith.constant 0.000000e+00 : f32
    %25 = vector.broadcast %cst_7 : f32 to vector<16x1xf32>
    %26 = arith.select %23, %24, %25 : vector<16x1xi1>, vector<16x1xf32>
    %c0_8 = arith.constant 0 : index
    %c0_9 = arith.constant 0 : index
    %27 = vector.load %arg3[%c0_8, %c0_9] : memref<16x1xf32, #tpu.memory_space<vmem>>, vector<16x1xf32>
    tpu.vector_store %arg3[%c0_8, %c0_9], %26 {strides = array<i32>} : memref<16x1xf32, #tpu.memory_space<vmem>>, vector<16x1xf32>,
    return
  }
  func.func @transform_0(%arg0: i32) -> (i32, i32) {
    %c0_i32 = arith.constant 0 : i32
    %c0_i32_0 = arith.constant 0 : i32
    return %arg0, %c0_i32 : i32, i32
  }
  func.func @transform_1(%arg0: i32) -> (i32, i32) {
    %c0_i32 = arith.constant 0 : i32
    %c0_i32_0 = arith.constant 0 : i32
    return %arg0, %c0_i32 : i32, i32
  }
  func.func @transform_2(%arg0: i32) -> (i32, i32) {
    %c0_i32 = arith.constant 0 : i32
    %c0_i32_0 = arith.constant 0 : i32
    return %arg0, %c0_i32 : i32, i32
  }
}

</mosaic_0001>

<llo_original>
// kernel: tpu_custom_call.1
$region0: #{tpu_custom_call.1}
  #allocation0 [shape = 'u32[]', space=smem, size = 0x4, offset = 0x4, fixed_abs, tag = 'smem constant byte address 0x4 - core index']
  #allocation1 [shape = 'u32[144,128]{1,0:T(1,128)}', space=vmem, size = 0x12000, scoped, tag = 'internal scratch']
  %s0 = inlined_call_operand.vmem [shape: f32[16,128], index: 0, kind: input, shape index: {}]
  %s1 = inlined_call_operand.vmem [shape: s32[16,1], index: 1, kind: input, shape index: {}]
  %s2 = inlined_call_operand.vmem [shape: f32[16,1], index: 2, kind: output, shape index: {}]
  %s3 = sld [smem:[#allocation0]]
  $region18: #{tpu_custom_call.1} parent=0
    _
  %s5 = ssub.s32 1, %s3
  %s6 = scalar_select 0, %s5, %s3
  // Predicated region
  $region2: #{tpu_custom_call.1} parent=0 // pred_check
    _
  $region3: #{tpu_custom_call.1} parent=0 // pred_check_branch
    %8 = sbr.rel (0) target = $region5
  $region4: #{tpu_custom_call.1} parent=0 // pred_region
    _
  $region5: #{tpu_custom_call.1} parent=0 // pred_fallthru
    _
  // Predicated region
  $region6: #{tpu_custom_call.1} parent=0 // pred_check
    _
  $region7: #{tpu_custom_call.1} parent=0 // pred_check_branch
    %10 = sbr.rel (0) target = $region9
  $region8: #{tpu_custom_call.1} parent=0 // pred_region
    _
  $region9: #{tpu_custom_call.1} parent=0 // pred_fallthru
    _
  %v11 = vld [vmem:[%s0] sm:$0xff]
  %v12 = vld [vmem:[%s0 + $0x8] sm:$0xff]
  %v13 = vld [vmem:[%s1] sm:$0xff]
  %v14 = vld [vmem:[%s1 + $0x8] sm:$0xff]
  %15 = vmax.xlane.f32.xlu0 %v11
  %v16 = vpop.xlane.xlu0 %15
  %17 = vmax.xlane.f32.xlu0 %v12
  %v18 = vpop.xlane.xlu0 %17
  %v19 = vsub.f32 %v11, %v16
  %v20 = vsub.f32 %v12, %v18
  %v21 = vmul.f32 %v19, 1.442695
  %v22 = vpow.pop %v21
  %v23 = vmul.f32 %v20, 1.442695
  %v24 = vpow.pop %v23
  %25 = vadd.xlane.f32.xlu0 %v22
  %v26 = vpop.xlane.xlu0 %25
  %27 = vadd.xlane.f32.xlu0 %v24
  %v28 = vpop.xlane.xlu0 %27
  %v29 = vlog2.pop %v26
  %v30 = vmul.f32 %v29, 0.6931472
  %v31 = vlog2.pop %v28
  %v32 = vmul.f32 %v31, 0.6931472
  %v33 = vadd.f32 %v30, %v16
  %v34 = vadd.f32 %v32, %v18
  %v35 = vlaneseq
  %v36 = vand.u32 %v35, 127
  %37 = vset.pattern.permute.xlu0 0
  %38 = vperm.xlu0 %37, %v13
  %v39 = vpop.permute.xlu0 %38
  %40 = vset.pattern.permute.xlu0 0
  %41 = vperm.xlu0 %40, %v14
  %v42 = vpop.permute.xlu0 %41
  %vm43 = vcmp.eq.s32.totalorder %v36, %v39
  %vm44 = vcmp.eq.s32.totalorder %v36, %v42
  %v45 = vsel %vm43, %v11, 0.0
  %v46 = vsel %vm44, %v12, 0.0
  %47 = vadd.xlane.f32.xlu0 %v45
  %v48 = vpop.xlane.xlu0 %47
  %49 = vadd.xlane.f32.xlu0 %v46
  %v50 = vpop.xlane.xlu0 %49
  %s51 = smul.u32 0, 16
  %v52 = vlaneseq
  %v53 = vshrl.u32 %v52, 7
  %v54 = vadd.s32 %v53, 8
  %v55 = vstv %s51
  %v56 = vadd.s32 %v55, %v53
  %v57 = vadd.s32 %v55, %v54
  %vm58 = vcmp.lt.s32.totalorder %v56, 16
  %vm59 = vcmp.lt.s32.totalorder %v57, 16
  %v60 = vsub.f32 %v33, %v48
  %v61 = vsub.f32 %v34, %v50
  %v62 = vsel %vm58, %v60, 0.0
  %v63 = vsel %vm59, %v61, 0.0
  %vm64 = vcmask 7168
  %65 = vst.msk [vmem:[%s2] sm:$0xff] %vm64, %v62
  %66 = vst.msk [vmem:[%s2 + $0x8] sm:$0xff] %vm64, %v63
  // Predicated region
  $region10: #{tpu_custom_call.1} parent=0 // pred_check
    _
  $region11: #{tpu_custom_call.1} parent=0 // pred_check_branch
    %68 = sbr.rel (0) target = $region13
  $region12: #{tpu_custom_call.1} parent=0 // pred_region
    _
  $region13: #{tpu_custom_call.1} parent=0 // pred_fallthru
    _
  // Predicated region
  $region14: #{tpu_custom_call.1} parent=0 // pred_check
    _
  $region15: #{tpu_custom_call.1} parent=0 // pred_check_branch
    %70 = sbr.rel (0) target = $region17
  $region16: #{tpu_custom_call.1} parent=0 // pred_region
    _
  $region17: #{tpu_custom_call.1} parent=0 // pred_fallthru
    _

</llo_original>
